<compile_context>
chip_gen: v7x
topology: tpu7x:2x2x1
jax: 0.10.0
libtpu: 0.0.40
codegen_flags: <defaults>
</compile_context>

<pallas_src>
import functools

import jax
import jax.numpy as jnp
from jax.experimental import pallas as pl
from jax.experimental.pallas import tpu as pltpu


# -----------------------------------------------------------------------------
# Pallas kernels
# -----------------------------------------------------------------------------
def _matmul_affine_kernel(x_ref, w_ref, s_ref, b_ref, o_ref, *, relu):
    """o = relu?( (x @ w) * scale + bias )  — 1x1-conv / im2col / fc hot path."""
    acc = jnp.dot(x_ref[...], w_ref[...], preferred_element_type=jnp.float32)
    acc = acc * s_ref[...] + b_ref[...]
    if relu:
        acc = jnp.maximum(acc, 0.0)
    o_ref[...] = acc


def _dw3x3_s1_kernel(xp_ref, w_ref, s_ref, b_ref, o_ref, *, H, W):
    """Depthwise 3x3 conv, stride 1, over padded input, fused folded BN."""
    xp = xp_ref[...]                       # (1, H+2, W+2, C)
    w = w_ref[...]                         # (9, C)
    acc = jnp.zeros(o_ref.shape, jnp.float32)
    for t in range(9):
        dy, dx = divmod(t, 3)
        acc = acc + xp[:, dy:dy + H, dx:dx + W, :] * w[t]
    o_ref[...] = acc * s_ref[...] + b_ref[...]


def _dw3x3_s2_kernel(p00_ref, p01_ref, p10_ref, p11_ref, w_ref, s_ref, b_ref,
                     o_ref, *, Ho, Wo):
    """Depthwise 3x3 conv, stride 2, computed directly on the 4 spatial phase
    planes of the padded input (only contiguous windows inside the kernel)."""
    phases = ((p00_ref[...], p01_ref[...]),
              (p10_ref[...], p11_ref[...]))   # each (1, Ho+1, Wo+1, C)
    w = w_ref[...]                            # (9, C)
    acc = jnp.zeros(o_ref.shape, jnp.float32)
    for t in range(9):
        dy, dx = divmod(t, 3)
        ph = phases[dy % 2][dx % 2]
        acc = acc + ph[:, dy // 2:dy // 2 + Ho, dx // 2:dx // 2 + Wo, :] * w[t]
    o_ref[...] = acc * s_ref[...] + b_ref[...]


def _maxpool3x3_s2_kernel(p00_ref, p01_ref, p10_ref, p11_ref, o_ref, *, Ho, Wo):
    """3x3 max pool, stride 2, on the 4 phase planes of the -inf padded input."""
    phases = ((p00_ref[...], p01_ref[...]),
              (p10_ref[...], p11_ref[...]))
    acc = jnp.full(o_ref.shape, -jnp.inf, jnp.float32)
    for t in range(9):
        dy, dx = divmod(t, 3)
        ph = phases[dy % 2][dx % 2]
        acc = jnp.maximum(acc, ph[:, dy // 2:dy // 2 + Ho, dx // 2:dx // 2 + Wo, :])
    o_ref[...] = acc


# -----------------------------------------------------------------------------
# Pallas wrappers
# -----------------------------------------------------------------------------
_PAR = pltpu.CompilerParams(dimension_semantics=("parallel",),
                            vmem_limit_bytes=32 * 1024 * 1024)


def matmul_affine(x, w, scale, bias, relu):
    """x:(M,K) @ w:(K,N) -> (M,N) with fused per-column scale/bias (+ReLU)."""
    M, K = x.shape
    _, N = w.shape
    # Pad M up to the tile (instead of shrinking the tile) so the MXU stays fed
    # and the grid-step count stays small.
    TM = min(128, ((M + 7) // 8) * 8)
    Mp = ((M + TM - 1) // TM) * TM
    if Mp != M:
        x = jnp.pad(x, ((0, Mp - M), (0, 0)))
    grid = (Mp // TM,)
    out = pl.pallas_call(
        functools.partial(_matmul_affine_kernel, relu=relu),
        out_shape=jax.ShapeDtypeStruct((Mp, N), jnp.float32),
        grid=grid,
        in_specs=[
            pl.BlockSpec((TM, K), lambda i: (i, 0)),
            pl.BlockSpec((K, N), lambda i: (0, 0)),
            pl.BlockSpec((1, N), lambda i: (0, 0)),
            pl.BlockSpec((1, N), lambda i: (0, 0)),
        ],
        out_specs=pl.BlockSpec((TM, N), lambda i: (i, 0)),
        compiler_params=_PAR,
    )(x, w, scale.reshape(1, N), bias.reshape(1, N))
    return out[:M]


def conv1x1_bn(x, w, scale, bias, relu):
    """1x1 conv + folded BN (+ReLU) on NHWC input."""
    Nb, H, W, C = x.shape
    Cout = w.shape[1]
    y = matmul_affine(x.reshape(-1, C), w, scale, bias, relu)
    return y.reshape(Nb, H, W, Cout)


def _phase_split(xp):
    """Four spatial phase planes of a padded NHWC tensor (even H, W)."""
    return [xp[:, py::2, px::2, :] for py in (0, 1) for px in (0, 1)]


def depthwise3x3_bn(x, w, scale, bias, stride):
    """Depthwise 3x3 conv (pad=1, stride 1 or 2) + folded BN on NHWC input."""
    Nb, H, W, C = x.shape
    s2 = scale.reshape(1, C)
    b2 = bias.reshape(1, C)
    w_spec = pl.BlockSpec((9, C), lambda n: (0, 0))
    v_spec = pl.BlockSpec((1, C), lambda n: (0, 0))

    if stride == 1:
        xp = jnp.pad(x, ((0, 0), (1, 1), (1, 1), (0, 0)))
        return pl.pallas_call(
            functools.partial(_dw3x3_s1_kernel, H=H, W=W),
            out_shape=jax.ShapeDtypeStruct((Nb, H, W, C), jnp.float32),
            grid=(Nb,),
            in_specs=[
                pl.BlockSpec((1, H + 2, W + 2, C), lambda n: (n, 0, 0, 0)),
                w_spec, v_spec, v_spec,
            ],
            out_specs=pl.BlockSpec((1, H, W, C), lambda n: (n, 0, 0, 0)),
            compiler_params=_PAR,
        )(xp, w, s2, b2)

    # stride == 2: stride-2 output computed directly in-kernel via phase planes.
    Ho, Wo = H // 2, W // 2
    xp = jnp.pad(x, ((0, 0), (1, 1), (1, 1), (0, 0)))
    phases = _phase_split(xp)                       # 4 x (Nb, Ho+1, Wo+1, C)
    ph_spec = pl.BlockSpec((1, Ho + 1, Wo + 1, C), lambda n: (n, 0, 0, 0))
    return pl.pallas_call(
        functools.partial(_dw3x3_s2_kernel, Ho=Ho, Wo=Wo),
        out_shape=jax.ShapeDtypeStruct((Nb, Ho, Wo, C), jnp.float32),
        grid=(Nb,),
        in_specs=[ph_spec, ph_spec, ph_spec, ph_spec, w_spec, v_spec, v_spec],
        out_specs=pl.BlockSpec((1, Ho, Wo, C), lambda n: (n, 0, 0, 0)),
        compiler_params=_PAR,
    )(*phases, w, s2, b2)


def maxpool3x3_s2(x):
    """MaxPool2d(kernel=3, stride=2, padding=1) on NHWC input."""
    Nb, H, W, C = x.shape
    Ho, Wo = H // 2, W // 2
    xp = jnp.pad(x, ((0, 0), (1, 1), (1, 1), (0, 0)), constant_values=-jnp.inf)
    phases = _phase_split(xp)
    ph_spec = pl.BlockSpec((1, Ho + 1, Wo + 1, C), lambda n: (n, 0, 0, 0))
    return pl.pallas_call(
        functools.partial(_maxpool3x3_s2_kernel, Ho=Ho, Wo=Wo),
        out_shape=jax.ShapeDtypeStruct((Nb, Ho, Wo, C), jnp.float32),
        grid=(Nb,),
        in_specs=[ph_spec, ph_spec, ph_spec, ph_spec],
        out_specs=pl.BlockSpec((1, Ho, Wo, C), lambda n: (n, 0, 0, 0)),
        compiler_params=_PAR,
    )(*phases)


def conv3x3_s2_bn_relu(x, w, scale, bias):
    """Regular 3x3 conv, stride 2, pad 1 (conv1) via im2col + Pallas matmul."""
    Nb, H, W, Cin = x.shape
    Cout = w.shape[-1]
    Ho, Wo = H // 2, W // 2
    xp = jnp.pad(x, ((0, 0), (1, 1), (1, 1), (0, 0)))
    cols = []
    for dy in range(3):
        for dx in range(3):
            cols.append(xp[:, dy:dy + 2 * Ho:2, dx:dx + 2 * Wo:2, :])
    patches = jnp.concatenate(cols, axis=-1)               # (N, Ho, Wo, 9*Cin)
    y = matmul_affine(patches.reshape(-1, 9 * Cin),
                      w.reshape(9 * Cin, Cout), scale, bias, relu=True)
    return y.reshape(Nb, Ho, Wo, Cout)


# -----------------------------------------------------------------------------
# ShuffleNetV2 forward (NHWC glue around the Pallas kernels)
# -----------------------------------------------------------------------------
def channel_shuffle_nhwc(x, groups):
    Nb, H, W, C = x.shape
    cpg = C // groups
    x = x.reshape(Nb, H, W, groups, cpg)
    x = jnp.transpose(x, (0, 1, 2, 4, 3))
    return x.reshape(Nb, H, W, C)


def _branch1(x, p, stride):
    y = depthwise3x3_bn(x, p['b1_dw_w'], p['b1_dw_s'], p['b1_dw_b'], stride)
    y = conv1x1_bn(y, p['b1_pw_w'], p['b1_pw_s'], p['b1_pw_b'], relu=True)
    return y


def _branch2(x, p, stride):
    y = conv1x1_bn(x, p['b2_pw1_w'], p['b2_pw1_s'], p['b2_pw1_b'], relu=True)
    y = depthwise3x3_bn(y, p['b2_dw_w'], p['b2_dw_s'], p['b2_dw_b'], stride)
    y = conv1x1_bn(y, p['b2_pw2_w'], p['b2_pw2_s'], p['b2_pw2_b'], relu=True)
    return y


def inverted_residual(x, p):
    stride = p['stride']
    if stride == 1:
        C = x.shape[-1]
        x1, x2 = x[..., :C // 2], x[..., C // 2:]
        out = jnp.concatenate([x1, _branch2(x2, p, stride)], axis=-1)
    else:
        out = jnp.concatenate([_branch1(x, p, stride),
                               _branch2(x, p, stride)], axis=-1)
    return channel_shuffle_nhwc(out, 2)


def shufflenet_v2_forward(params, x_nchw):
    x = jnp.transpose(x_nchw, (0, 2, 3, 1)).astype(jnp.float32)  # NCHW -> NHWC
    x = conv3x3_s2_bn_relu(x, params['conv1_w'], params['conv1_s'], params['conv1_b'])
    x = maxpool3x3_s2(x)
    for blocks in params['stages']:
        for p in blocks:
            x = inverted_residual(x, p)
    x = conv1x1_bn(x, params['conv5_w'], params['conv5_s'], params['conv5_b'], relu=True)
    x = jnp.mean(x, axis=(1, 2))                                  # global avg pool
    ones = jnp.ones((params['fc_w'].shape[1],), jnp.float32)
    logits = matmul_affine(x, params['fc_w'], ones, params['fc_b'], relu=False)
    return logits


# -----------------------------------------------------------------------------
# Deterministic parameter initialization (eval-mode BN folded to scale/bias)
# -----------------------------------------------------------------------------
def _fold_bn(gamma, beta, mean, var, eps=1e-5):
    scale = gamma / jnp.sqrt(var + eps)
    bias = beta - mean * scale
    return scale, bias


def _init_bn(key, c):
    k1, k2, k3, k4 = jax.random.split(key, 4)
    gamma = jax.random.uniform(k1, (c,), minval=0.5, maxval=1.5)
    beta = jax.random.normal(k2, (c,)) * 0.1
    mean = jax.random.normal(k3, (c,)) * 0.1
    var = jax.random.uniform(k4, (c,), minval=0.5, maxval=1.5)
    return _fold_bn(gamma, beta, mean, var)


def _init_pw(key, cin, cout):
    return jax.random.normal(key, (cin, cout), jnp.float32) / jnp.sqrt(cin)


def _init_dw(key, c):
    return jax.random.normal(key, (9, c), jnp.float32) / 3.0


def _init_conv3(key, cin, cout):
    return jax.random.normal(key, (3, 3, cin, cout), jnp.float32) / jnp.sqrt(9 * cin)


def _init_block(key, inp, oup, stride):
    bf = oup // 2
    assert stride != 1 or inp == bf * 2
    ks = jax.random.split(key, 10)
    p = {'stride': stride}
    if stride > 1:
        p['b1_dw_w'] = _init_dw(ks[0], inp)
        p['b1_dw_s'], p['b1_dw_b'] = _init_bn(ks[1], inp)
        p['b1_pw_w'] = _init_pw(ks[2], inp, bf)
        p['b1_pw_s'], p['b1_pw_b'] = _init_bn(ks[3], bf)
    c2_in = inp if stride > 1 else bf
    p['b2_pw1_w'] = _init_pw(ks[4], c2_in, bf)
    p['b2_pw1_s'], p['b2_pw1_b'] = _init_bn(ks[5], bf)
    p['b2_dw_w'] = _init_dw(ks[6], bf)
    p['b2_dw_s'], p['b2_dw_b'] = _init_bn(ks[7], bf)
    p['b2_pw2_w'] = _init_pw(ks[8], bf, bf)
    p['b2_pw2_s'], p['b2_pw2_b'] = _init_bn(ks[9], bf)
    return p


def init_shufflenet_v2(key, stages_repeats, stages_out_channels, num_classes):
    assert len(stages_repeats) == 3 and len(stages_out_channels) == 5
    ks = jax.random.split(key, 7)
    params = {}
    c1 = stages_out_channels[0]
    params['conv1_w'] = _init_conv3(ks[0], 3, c1)
    params['conv1_s'], params['conv1_b'] = _init_bn(ks[1], c1)
    input_channels = c1
    stage_keys = jax.random.split(ks[2], 3)
    stages = []
    for si, (rep, oc) in enumerate(zip(stages_repeats, stages_out_channels[1:4])):
        bkeys = jax.random.split(stage_keys[si], rep)
        blocks = [_init_block(bkeys[0], input_channels, oc, 2)]
        for r in range(1, rep):
            blocks.append(_init_block(bkeys[r], oc, oc, 1))
        input_channels = oc
        stages.append(blocks)
    params['stages'] = stages
    c5 = stages_out_channels[-1]
    params['conv5_w'] = _init_pw(ks[3], input_channels, c5)
    params['conv5_s'], params['conv5_b'] = _init_bn(ks[4], c5)
    params['fc_w'] = jax.random.normal(ks[5], (c5, num_classes), jnp.float32) / jnp.sqrt(c5)
    params['fc_b'] = jax.random.normal(ks[6], (num_classes,), jnp.float32) * 0.01
    return params


# -----------------------------------------------------------------------------
if __name__ == "__main__":
    key = jax.random.PRNGKey(0)
    kp, kx = jax.random.split(key)

    # Small ShuffleNetV2 config: stages_repeats=[2,2,2], channels=[8,16,32,64,128]
    stages_repeats = [2, 2, 2]
    stages_out_channels = [8, 16, 32, 64, 128]
    num_classes = 10

    params = init_shufflenet_v2(kp, stages_repeats, stages_out_channels, num_classes)

    # NCHW input, like the PyTorch module (even spatial sizes, as in 32/224).
    x = jax.random.normal(kx, (2, 3, 32, 32), jnp.float32)

    logits = shufflenet_v2_forward(params, x)
    logits = jax.block_until_ready(logits)
    assert logits.shape == (2, num_classes), logits.shape
    print("KERNEL_OK")
</pallas_src>

<mosaic_0001>
module attributes {stable_mosaic.version = 11 : i64} {
  func.func @_matmul_affine_kernel(%arg0: i32, %arg1: memref<128x27xf32, #tpu.memory_space<vmem>>, %arg2: memref<27x8xf32, #tpu.memory_space<vmem>>, %arg3: memref<1x8xf32, #tpu.memory_space<vmem>>, %arg4: memref<1x8xf32, #tpu.memory_space<vmem>>, %arg5: memref<128x8xf32, #tpu.memory_space<vmem>>) attributes {dimension_semantics = [#tpu.dimension_semantics<parallel>], iteration_bounds = array<i64: 4>, scalar_prefetch = 0 : i64, scratch_operands = 0 : i64, tpu.core_type = #tpu.core_type<tc>, window_params = [{transform_indices = @transform_0, window_bounds = array<i64: 128, 27>}, {pipeline_mode = #tpu.pipeline_mode<synchronous>, transform_indices = @transform_1, window_bounds = array<i64: 27, 8>}, {pipeline_mode = #tpu.pipeline_mode<synchronous>, transform_indices = @transform_2, window_bounds = array<i64: 1, 8>}, {pipeline_mode = #tpu.pipeline_mode<synchronous>, transform_indices = @transform_3, window_bounds = array<i64: 1, 8>}, {transform_indices = @transform_4, window_bounds = array<i64: 128, 8>}]} {
    %c0 = arith.constant 0 : index
    %c0_0 = arith.constant 0 : index
    %0 = vector.load %arg1[%c0, %c0_0] : memref<128x27xf32, #tpu.memory_space<vmem>>, vector<128x27xf32>
    %c0_1 = arith.constant 0 : index
    %c0_2 = arith.constant 0 : index
    %1 = vector.load %arg2[%c0_1, %c0_2] : memref<27x8xf32, #tpu.memory_space<vmem>>, vector<27x8xf32>
    %cst = arith.constant dense<0.000000e+00> : vector<128x8xf32>
    %2 = tpu.matmul %0, %1, %cst {dimension_numbers = #tpu.dot_dimension_numbers<[1], [0], [0], [1], [0, 0, 1, 1], [], []>} : vector<128x27xf32>, vector<27x8xf32>, vector<128x8xf32> -> vector<128x8xf32>
    %c0_3 = arith.constant 0 : index
    %c0_4 = arith.constant 0 : index
    %3 = vector.load %arg3[%c0_3, %c0_4] : memref<1x8xf32, #tpu.memory_space<vmem>>, vector<1x8xf32>
    %4 = vector.broadcast %3 : vector<1x8xf32> to vector<128x8xf32>
    %5 = arith.mulf %2, %4 : vector<128x8xf32>
    %c0_5 = arith.constant 0 : index
    %c0_6 = arith.constant 0 : index
    %6 = vector.load %arg4[%c0_5, %c0_6] : memref<1x8xf32, #tpu.memory_space<vmem>>, vector<1x8xf32>
    %7 = vector.broadcast %6 : vector<1x8xf32> to vector<128x8xf32>
    %8 = arith.addf %5, %7 : vector<128x8xf32>
    %cst_7 = arith.constant 0.000000e+00 : f32
    %9 = vector.broadcast %cst_7 : f32 to vector<128x8xf32>
    %10 = arith.maximumf %8, %9 : vector<128x8xf32>
    %c0_8 = arith.constant 0 : index
    %c0_9 = arith.constant 0 : index
    %11 = vector.load %arg5[%c0_8, %c0_9] : memref<128x8xf32, #tpu.memory_space<vmem>>, vector<128x8xf32>
    tpu.vector_store %arg5[%c0_8, %c0_9], %10 {strides = array<i32>} : memref<128x8xf32, #tpu.memory_space<vmem>>, vector<128x8xf32>,
    return
  }
  func.func @transform_0(%arg0: i32) -> (i32, i32) {
    %c0_i32 = arith.constant 0 : i32
    %c0_i32_0 = arith.constant 0 : i32
    return %arg0, %c0_i32 : i32, i32
  }
  func.func @transform_1(%arg0: i32) -> (i32, i32) {
    %c0_i32 = arith.constant 0 : i32
    %c0_i32_0 = arith.constant 0 : i32
    %c0_i32_1 = arith.constant 0 : i32
    return %c0_i32, %c0_i32_0 : i32, i32
  }
  func.func @transform_2(%arg0: i32) -> (i32, i32) {
    %c0_i32 = arith.constant 0 : i32
    %c0_i32_0 = arith.constant 0 : i32
    %c0_i32_1 = arith.constant 0 : i32
    return %c0_i32, %c0_i32_0 : i32, i32
  }
  func.func @transform_3(%arg0: i32) -> (i32, i32) {
    %c0_i32 = arith.constant 0 : i32
    %c0_i32_0 = arith.constant 0 : i32
    %c0_i32_1 = arith.constant 0 : i32
    return %c0_i32, %c0_i32_0 : i32, i32
  }
  func.func @transform_4(%arg0: i32) -> (i32, i32) {
    %c0_i32 = arith.constant 0 : i32
    %c0_i32_0 = arith.constant 0 : i32
    return %arg0, %c0_i32 : i32, i32
  }
}

</mosaic_0001>

<llo_original>
// kernel: tpu_custom_call.1
$region0: #{tpu_custom_call.1}
  #allocation0 [shape = 'u32[]', space=smem, size = 0x4, offset = 0x4, fixed_abs, tag = 'smem constant byte address 0x4 - core index']
  #allocation1 [shape = 'u32[144,128]{1,0:T(1,128)}', space=vmem, size = 0x12000, scoped, tag = 'internal scratch']
  %s0 = inlined_call_operand.vmem [shape: f32[512,27], index: 0, kind: input, shape index: {}]
  %s1 = inlined_call_operand.vmem [shape: f32[27,8], index: 1, kind: input, shape index: {}]
  %s2 = inlined_call_operand.vmem [shape: f32[1,8], index: 2, kind: input, shape index: {}]
  %s3 = inlined_call_operand.vmem [shape: f32[1,8], index: 3, kind: input, shape index: {}]
  %s4 = inlined_call_operand.vmem [shape: f32[512,8], index: 4, kind: output, shape index: {}]
  %s5 = sld [smem:[#allocation0]]
  $region49: #{tpu_custom_call.1} parent=0
    _
  %s7 = ssub.s32 1, %s5
  %s8 = scalar_select 0, %s7, %s5
  loop: start=0, step=1, limit=6
  $region2: #{tpu_custom_call.1} parent=0 // loop_pre_header
    _
  $region3: #{tpu_custom_call.1} parent=0 // loop_header
    %s10 = sphi 0, %s14
    %p11 = scmp.ge.s32.totalorder %s10, 6
    %s20 = sphi 0, %s22
    %s23 = sphi 0, %s20
    %s24 = sphi 0, %s23
    %s40 = sphi 0, %s24
    %s44 = sphi 0, %s44
    %s46 = sphi 0, %s44
    %s47 = sphi 0, %s46
    %s61 = sphi 0, %s47
    %s65 = sphi 0, %s65
    %s67 = sphi 0, %s65
    %s68 = sphi 0, %s67
    %s82 = sphi 0, %s68
    %s86 = sphi 0, %s86
    %s88 = sphi 0, %s86
    %s89 = sphi 0, %s88
    %s103 = sphi 0, %s89
    %s109 = sphi 0, %s111
    %s112 = sphi 0, %s109
    %s113 = sphi 0, %s112
    %s129 = sphi 0, %s113
  $region4: #{tpu_custom_call.1} parent=0 // loop_header_branch
    %13 = sbr.rel (%p11) target = $region8
  $region5: #{tpu_custom_call.1} parent=0 // loop_body
    %s15 = ssub.s32 %s10, 1
    %s16 = ssub.s32 %s10, 2
    %s17 = sadd.s32 %s10, 1
    %s18 = ssub.s32 %s10, %s17
    %p19 = scmp.eq.s32.totalorder %s18, 0
    %s21 = sadd.s32 %s20, 1
    %s22 = scalar_select %p19, %s20, %s21
    %p25 = pneg %p19
    %p26 = scmp.eq.s32.totalorder %s10, 3
    %p27 = por %p25, %p26
    %p28 = scmp.ne.s32.totalorder %s20, %s23
    %p29 = scmp.eq.s32.totalorder %s10, 0
    %p30 = por %p28, %p29
    %p31 = scmp.ne.s32.totalorder %s20, %s23
    %p32 = scmp.eq.s32.totalorder %s15, 3
    %p33 = por %p31, %p32
    %p34 = scmp.ne.s32.totalorder %s23, %s24
    %p35 = scmp.eq.s32.totalorder %s15, 0
    %p36 = por %p34, %p35
    %p37 = scmp.ne.s32.totalorder %s23, %s24
    %p38 = scmp.eq.s32.totalorder %s16, 3
    %p39 = por %p37, %p38
    %p41 = scmp.ne.s32.totalorder %s24, %s40
    %p42 = scmp.eq.s32.totalorder %s16, 0
    %p43 = por %p41, %p42
    %s45 = sadd.s32 %s44, 1
    %p48 = scmp.eq.s32.totalorder %s10, 3
    %p49 = scmp.ne.s32.totalorder %s44, %s46
    %p50 = scmp.eq.s32.totalorder %s10, 0
    %p51 = por %p49, %p50
    %p52 = scmp.ne.s32.totalorder %s44, %s46
    %p53 = scmp.eq.s32.totalorder %s15, 3
    %p54 = por %p52, %p53
    %p55 = scmp.ne.s32.totalorder %s46, %s47
    %p56 = scmp.eq.s32.totalorder %s15, 0
    %p57 = por %p55, %p56
    %p58 = scmp.ne.s32.totalorder %s46, %s47
    %p59 = scmp.eq.s32.totalorder %s16, 3
    %p60 = por %p58, %p59
    %p62 = scmp.ne.s32.totalorder %s47, %s61
    %p63 = scmp.eq.s32.totalorder %s16, 0
    %p64 = por %p62, %p63
    %s66 = sadd.s32 %s65, 1
    %p69 = scmp.eq.s32.totalorder %s10, 3
    %p70 = scmp.ne.s32.totalorder %s65, %s67
    %p71 = scmp.eq.s32.totalorder %s10, 0
    %p72 = por %p70, %p71
    %p73 = scmp.ne.s32.totalorder %s65, %s67
    %p74 = scmp.eq.s32.totalorder %s15, 3
    %p75 = por %p73, %p74
    %p76 = scmp.ne.s32.totalorder %s67, %s68
    %p77 = scmp.eq.s32.totalorder %s15, 0
    %p78 = por %p76, %p77
    %p79 = scmp.ne.s32.totalorder %s67, %s68
    %p80 = scmp.eq.s32.totalorder %s16, 3
    %p81 = por %p79, %p80
    %p83 = scmp.ne.s32.totalorder %s68, %s82
    %p84 = scmp.eq.s32.totalorder %s16, 0
    %p85 = por %p83, %p84
    %s87 = sadd.s32 %s86, 1
    %p90 = scmp.eq.s32.totalorder %s10, 3
    %p91 = scmp.ne.s32.totalorder %s86, %s88
    %p92 = scmp.eq.s32.totalorder %s10, 0
    %p93 = por %p91, %p92
    %p94 = scmp.ne.s32.totalorder %s86, %s88
    %p95 = scmp.eq.s32.totalorder %s15, 3
    %p96 = por %p94, %p95
    %p97 = scmp.ne.s32.totalorder %s88, %s89
    %p98 = scmp.eq.s32.totalorder %s15, 0
    %p99 = por %p97, %p98
    %p100 = scmp.ne.s32.totalorder %s88, %s89
    %p101 = scmp.eq.s32.totalorder %s16, 3
    %p102 = por %p100, %p101
    %p104 = scmp.ne.s32.totalorder %s89, %s103
    %p105 = scmp.eq.s32.totalorder %s16, 0
    %p106 = por %p104, %p105
    %s107 = ssub.s32 %s10, %s17
    %p108 = scmp.eq.s32.totalorder %s107, 0
    %s110 = sadd.s32 %s109, 1
    %s111 = scalar_select %p108, %s109, %s110
    %p114 = pneg %p108
    %p115 = scmp.eq.s32.totalorder %s10, 3
    %p116 = por %p114, %p115
    %p117 = scmp.ne.s32.totalorder %s109, %s112
    %p118 = scmp.eq.s32.totalorder %s10, 0
    %p119 = por %p117, %p118
    %p120 = scmp.ne.s32.totalorder %s109, %s112
    %p121 = scmp.eq.s32.totalorder %s15, 3
    %p122 = por %p120, %p121
    %p123 = scmp.ne.s32.totalorder %s112, %s113
    %p124 = scmp.eq.s32.totalorder %s15, 0
    %p125 = por %p123, %p124
    %p126 = scmp.ne.s32.totalorder %s112, %s113
    %p127 = scmp.eq.s32.totalorder %s16, 3
    %p128 = por %p126, %p127
    %p130 = scmp.ne.s32.totalorder %s113, %s129
    %p131 = scmp.eq.s32.totalorder %s16, 0
    %p132 = por %p130, %p131
    %p133 = scmp.le.s32.totalorder 1, %s10
    %p134 = scmp.lt.s32.totalorder %s10, 5
    %p135 = pnand %p133, %p134
    %p136 = pneg %p135
    // Predicated region
    $region9: #{tpu_custom_call.1} parent=5 // pred_check
      _
    $region10: #{tpu_custom_call.1} parent=5 // pred_check_branch
      %138 = sbr.rel (%p135) target = $region12
    $region11: #{tpu_custom_call.1} parent=5 // pred_region
      %s139 = ssub.s32 %s10, 1
      // Predicated region
      $region13: #{tpu_custom_call.1} parent=11 // pred_check
        %p140 = pneg %p57
      $region14: #{tpu_custom_call.1} parent=11 // pred_check_branch
        %142 = sbr.rel (%p140) target = $region16
      $region15: #{tpu_custom_call.1} parent=11 // pred_region
        _
      $region16: #{tpu_custom_call.1} parent=11 // pred_fallthru
        _
      // Predicated region
      $region17: #{tpu_custom_call.1} parent=11 // pred_check
        %p143 = pneg %p78
      $region18: #{tpu_custom_call.1} parent=11 // pred_check_branch
        %145 = sbr.rel (%p143) target = $region20
      $region19: #{tpu_custom_call.1} parent=11 // pred_region
        _
      $region20: #{tpu_custom_call.1} parent=11 // pred_fallthru
        _
      // Predicated region
      $region21: #{tpu_custom_call.1} parent=11 // pred_check
        %p146 = pneg %p99
      $region22: #{tpu_custom_call.1} parent=11 // pred_check_branch
        %148 = sbr.rel (%p146) target = $region24
      $region23: #{tpu_custom_call.1} parent=11 // pred_region
        _
      $region24: #{tpu_custom_call.1} parent=11 // pred_fallthru
        _
    $region12: #{tpu_custom_call.1} parent=5 // pred_fallthru
      _
    %p149 = scmp.lt.s32.totalorder %s10, 4
    // Predicated region
    $region25: #{tpu_custom_call.1} parent=5 // pred_check
      %p150 = pneg %p149
    $region26: #{tpu_custom_call.1} parent=5 // pred_check_branch
      %152 = sbr.rel (%p150) target = $region28
    $region27: #{tpu_custom_call.1} parent=5 // pred_region
      // Predicated region
      $region29: #{tpu_custom_call.1} parent=27 // pred_check
        %p153 = pneg %p30
      $region30: #{tpu_custom_call.1} parent=27 // pred_check_branch
        %155 = sbr.rel (%p153) target = $region32
      $region31: #{tpu_custom_call.1} parent=27 // pred_region
        %s156 = smul.u32 16, %s10
        %p157 = scmp.lt.s32.totalorder %s156, 63
        %s158 = scalar_select %p157, %s156, 63
        %s159 = smul.addr %s158, 8
        %s160 = scalar_lea.vmem %s0, %s159
        %s161 = smul.u32 16, %s10
      $region32: #{tpu_custom_call.1} parent=27 // pred_fallthru
        _
    $region28: #{tpu_custom_call.1} parent=5 // pred_fallthru
      _
    %p162 = scmp.le.s32.totalorder 1, %s10
    %p163 = scmp.lt.s32.totalorder %s10, 5
    %p164 = pnand %p162, %p163
    %p165 = pneg %p164
    // Predicated region
    $region33: #{tpu_custom_call.1} parent=5 // pred_check
      _
    $region34: #{tpu_custom_call.1} parent=5 // pred_check_branch
      %167 = sbr.rel (%p164) target = $region36
    $region35: #{tpu_custom_call.1} parent=5 // pred_region
      %s168 = ssub.s32 %s10, 1
      %s169 = smul.u32 16, %s15
      %p170 = scmp.lt.s32.totalorder %s169, 63
      %s171 = scalar_select %p170, %s169, 63
      %s172 = smul.addr %s171, 8
      %s173 = scalar_lea.vmem %s0, %s172
      %p174 = pneg %p36
      %p175 = pneg %p33
      %p176 = pneg %p57
      %p177 = pneg %p54
      %p178 = pneg %p78
      %p179 = pneg %p75
      %p180 = pneg %p99
      %p181 = pneg %p96
      %p182 = pneg %p125
      %p183 = pneg %p122
      %s184 = smul.u32 16, %s15
      %p185 = scmp.lt.s32.totalorder %s184, 63
      %s186 = scalar_select %p185, %s184, 63
      %s187 = smul.addr %s186, 8
      %s188 = scalar_lea.vmem %s4, %s187
      %s189 = smul.u32 16, %s15
      %p190 = scmp.lt.s32.totalorder %s189, 63
      %s191 = scalar_select %p190, %s189, 63
      %s192 = smul.addr %s191, 8
      %s193 = scalar_lea.vmem %s0, %s192
      %s194 = smul.u32 16, %s15
      %s195 = smul.u32 16, %s15
      %p196 = scmp.lt.s32.totalorder %s195, 63
      %s197 = scalar_select %p196, %s195, 63
      %s198 = smul.addr %s197, 8
      %s199 = scalar_lea.vmem %s4, %s198
      %s200 = smul.u32 16, %s15
      %v201 = vld [vmem:[%s193] sm:$0xff]
      %v202 = vld [vmem:[%s193 + $0x8] sm:$0xff]
      %v203 = vld [vmem:[%s193 + $0x10] sm:$0xff]
      %v204 = vld [vmem:[%s193 + $0x18] sm:$0xff]
      %v205 = vld [vmem:[%s193 + $0x20] sm:$0xff]
      %v206 = vld [vmem:[%s193 + $0x28] sm:$0xff]
      %v207 = vld [vmem:[%s193 + $0x30] sm:$0xff]
      %v208 = vld [vmem:[%s193 + $0x38] sm:$0xff]
      %v209 = vld [vmem:[%s193 + $0x40] sm:$0xff]
      %v210 = vld [vmem:[%s193 + $0x48] sm:$0xff]
      %v211 = vld [vmem:[%s193 + $0x50] sm:$0xff]
      %v212 = vld [vmem:[%s193 + $0x58] sm:$0xff]
      %v213 = vld [vmem:[%s193 + $0x60] sm:$0xff]
      %v214 = vld [vmem:[%s193 + $0x68] sm:$0xff]
      %v215 = vld [vmem:[%s193 + $0x70] sm:$0xff]
      %v216 = vld [vmem:[%s193 + $0x78] sm:$0xff]
      %v217 = vld [vmem:[%s1] sm:$0xff]
      %v218 = vld [vmem:[%s1 + $0x8] sm:$0xff]
      %v219 = vld [vmem:[%s1 + $0x10] sm:$0xff]
      %v220 = vld [vmem:[%s1 + $0x18] sm:$0x7]
      %vm221 = vcmask 220160
      %v223 = vsel %vm221, %v201, 0
      %v226 = vsel %vm221, %v202, 0
      %v229 = vsel %vm221, %v203, 0
      %v232 = vsel %vm221, %v204, 0
      %v235 = vsel %vm221, %v205, 0
      %v238 = vsel %vm221, %v206, 0
      %v241 = vsel %vm221, %v207, 0
      %v244 = vsel %vm221, %v208, 0
      %v247 = vsel %vm221, %v209, 0
      %v250 = vsel %vm221, %v210, 0
      %v253 = vsel %vm221, %v211, 0
      %v256 = vsel %vm221, %v212, 0
      %v259 = vsel %vm221, %v213, 0
      %v262 = vsel %vm221, %v214, 0
      %v265 = vsel %vm221, %v215, 0
      %v268 = vsel %vm221, %v216, 0
      %vm270 = vcmask 1042432
      %v272 = vsel %vm270, %v220, 0
      %274 = vmatprep.subr.mxu0 0.0
      %275 = vmatpush1.msra.mxu0 %v217
      %276 = vmatprep.subr.mxu0 0.0
      %277 = vmatpush1.msra.mxu0 %v218
      %278 = vmatprep.subr.mxu0 0.0
      %279 = vmatpush1.msra.mxu0 %v219
      %280 = vmatprep.subr.mxu0 0.0
      %281 = vmatpush1.msra.mxu0 %v272
      %282 = vmatprep.subr.mxu0 0.0
      %283 = vmatpush1.msra.mxu0 0.0
      %284 = vmatprep.subr.mxu0 0.0
      %285 = vmatpush1.msra.mxu0 0.0
      %286 = vmatprep.subr.mxu0 0.0
      %287 = vmatpush1.msra.mxu0 0.0
      %288 = vmatprep.subr.mxu0 0.0
      %289 = vmatpush1.msra.mxu0 0.0
      %290 = vmatprep.subr.mxu0 0.0
      %291 = vmatpush1.msra.mxu0 0.0
      %292 = vmatprep.subr.mxu0 0.0
      %293 = vmatpush1.msra.mxu0 0.0
      %294 = vmatprep.subr.mxu0 0.0
      %295 = vmatpush1.msra.mxu0 0.0
      %296 = vmatprep.subr.mxu0 0.0
      %297 = vmatpush1.msra.mxu0 0.0
      %298 = vmatprep.subr.mxu0 0.0
      %299 = vmatpush1.msra.mxu0 0.0
      %300 = vmatprep.subr.mxu0 0.0
      %301 = vmatpush1.msra.mxu0 0.0
      %302 = vmatprep.subr.mxu0 0.0
      %303 = vmatpush1.msra.mxu0 0.0
      %304 = vmatprep.subr.mxu0 0.0
      %305 = vmatpush1.msra.mxu0 0.0
      %306 = vmatprep.subr.mxu0 0.0
      %307 = vmatpush1.msra.mxu0 0.0
      %308 = vmatprep.subr.mxu0 0.0
      %309 = vmatpush1.msra.mxu0 0.0
      %310 = vmatprep.subr.mxu0 0.0
      %311 = vmatpush1.msra.mxu0 0.0
      %312 = vmatprep.subr.mxu0 0.0
      %313 = vmatpush1.msra.mxu0 0.0
      %314 = vmatprep.subr.mxu0 0.0
      %315 = vmatpush1.msra.mxu0 0.0
      %316 = vmatprep.subr.mxu0 0.0
      %317 = vmatpush1.msra.mxu0 0.0
      %318 = vmatprep.subr.mxu0 0.0
      %319 = vmatpush1.msra.mxu0 0.0
      %320 = vmatprep.subr.mxu0 0.0
      %321 = vmatpush1.msra.mxu0 0.0
      %322 = vmatprep.subr.mxu0 0.0
      %323 = vmatpush1.msra.mxu0 0.0
      %324 = vmatprep.subr.mxu0 0.0
      %325 = vmatpush1.msra.mxu0 0.0
      %326 = vmatprep.subr.mxu0 0.0
      %327 = vmatpush1.msra.mxu0 0.0
      %328 = vmatprep.subr.mxu0 0.0
      %329 = vmatpush1.msra.mxu0 0.0
      %330 = vmatprep.subr.mxu0 0.0
      %331 = vmatpush1.msra.mxu0 0.0
      %332 = vmatprep.subr.mxu0 0.0
      %333 = vmatpush1.msra.mxu0 0.0
      %334 = vmatprep.subr.mxu0 0.0
      %335 = vmatpush1.msra.mxu0 0.0
      %336 = vmatprep.subr.mxu0 0.0
      %337 = vmatpush1.msra.mxu0 0.0
      %338 = vmatprep.mubr.f32.mxu0 0.0
      %339 = vmatmul.mubr.f32.gmra.mrb[0].mxu0 %v223
      %v340 = vpop.f32.mrb[0].mxu0
      %v341 = vadd.f32 0.0, %v340
      %v342 = vpop.f32.mrb[0].mxu0
      %343 = vmatprep.mubr.f32.mxu0 0.0
      %344 = vmatmul.mubr.f32.gmra.mrb[0].mxu0 %v226
      %v345 = vpop.f32.mrb[0].mxu0
      %v346 = vadd.f32 0.0, %v345
      %v347 = vpop.f32.mrb[0].mxu0
      %348 = vmatprep.mubr.f32.mxu0 0.0
      %349 = vmatmul.mubr.f32.gmra.mrb[0].mxu0 %v229
      %v350 = vpop.f32.mrb[0].mxu0
      %v351 = vadd.f32 0.0, %v350
      %v352 = vpop.f32.mrb[0].mxu0
      %353 = vmatprep.mubr.f32.mxu0 0.0
      %354 = vmatmul.mubr.f32.gmra.mrb[0].mxu0 %v232
      %v355 = vpop.f32.mrb[0].mxu0
      %v356 = vadd.f32 0.0, %v355
      %v357 = vpop.f32.mrb[0].mxu0
      %358 = vmatprep.mubr.f32.mxu0 0.0
      %359 = vmatmul.mubr.f32.gmra.mrb[0].mxu0 %v235
      %v360 = vpop.f32.mrb[0].mxu0
      %v361 = vadd.f32 0.0, %v360
      %v362 = vpop.f32.mrb[0].mxu0
      %363 = vmatprep.mubr.f32.mxu0 0.0
      %364 = vmatmul.mubr.f32.gmra.mrb[0].mxu0 %v238
      %v365 = vpop.f32.mrb[0].mxu0
      %v366 = vadd.f32 0.0, %v365
      %v367 = vpop.f32.mrb[0].mxu0
      %368 = vmatprep.mubr.f32.mxu0 0.0
      %369 = vmatmul.mubr.f32.gmra.mrb[0].mxu0 %v241
      %v370 = vpop.f32.mrb[0].mxu0
      %v371 = vadd.f32 0.0, %v370
      %v372 = vpop.f32.mrb[0].mxu0
      %373 = vmatprep.mubr.f32.mxu0 0.0
      %374 = vmatmul.mubr.f32.gmra.mrb[0].mxu0 %v244
      %v375 = vpop.f32.mrb[0].mxu0
      %v376 = vadd.f32 0.0, %v375
      %v377 = vpop.f32.mrb[0].mxu0
      %378 = vmatprep.mubr.f32.mxu0 0.0
      %379 = vmatmul.mubr.f32.gmra.mrb[0].mxu0 %v247
      %v380 = vpop.f32.mrb[0].mxu0
      %v381 = vadd.f32 0.0, %v380
      %v382 = vpop.f32.mrb[0].mxu0
      %383 = vmatprep.mubr.f32.mxu0 0.0
      %384 = vmatmul.mubr.f32.gmra.mrb[0].mxu0 %v250
      %v385 = vpop.f32.mrb[0].mxu0
      %v386 = vadd.f32 0.0, %v385
      %v387 = vpop.f32.mrb[0].mxu0
      %388 = vmatprep.mubr.f32.mxu0 0.0
      %389 = vmatmul.mubr.f32.gmra.mrb[0].mxu0 %v253
      %v390 = vpop.f32.mrb[0].mxu0
      %v391 = vadd.f32 0.0, %v390
      %v392 = vpop.f32.mrb[0].mxu0
      %393 = vmatprep.mubr.f32.mxu0 0.0
      %394 = vmatmul.mubr.f32.gmra.mrb[0].mxu0 %v256
      %v395 = vpop.f32.mrb[0].mxu0
      %v396 = vadd.f32 0.0, %v395
      %v397 = vpop.f32.mrb[0].mxu0
      %398 = vmatprep.mubr.f32.mxu0 0.0
      %399 = vmatmul.mubr.f32.gmra.mrb[0].mxu0 %v259
      %v400 = vpop.f32.mrb[0].mxu0
      %v401 = vadd.f32 0.0, %v400
      %v402 = vpop.f32.mrb[0].mxu0
      %403 = vmatprep.mubr.f32.mxu0 0.0
      %404 = vmatmul.mubr.f32.gmra.mrb[0].mxu0 %v262
      %v405 = vpop.f32.mrb[0].mxu0
      %v406 = vadd.f32 0.0, %v405
      %v407 = vpop.f32.mrb[0].mxu0
      %408 = vmatprep.mubr.f32.mxu0 0.0
      %409 = vmatmul.mubr.f32.gmra.mrb[0].mxu0 %v265
      %v410 = vpop.f32.mrb[0].mxu0
      %v411 = vadd.f32 0.0, %v410
      %v412 = vpop.f32.mrb[0].mxu0
      %413 = vmatprep.mubr.f32.mxu0 0.0
      %414 = vmatmul.mubr.f32.gmra.mrb[0].mxu0 %v268
      %v415 = vpop.f32.mrb[0].mxu0
      %v416 = vadd.f32 0.0, %v415
      %v417 = vpop.f32.mrb[0].mxu0
      %418 = vdwg.mxu0
      %v419 = vld [vmem:[%s2] sm:$0x1]
      %v421 = vlaneseq
      %v422 = vshrl.u32 %v421, 7
      %v423 = vsub.s32 0, %v422
      %v424 = vrot.slane %v419, %v423
      %v426 = vmul.f32 %v341, %v424
      %v427 = vmul.f32 %v346, %v424
      %v428 = vmul.f32 %v351, %v424
      %v429 = vmul.f32 %v356, %v424
      %v430 = vmul.f32 %v361, %v424
      %v431 = vmul.f32 %v366, %v424
      %v432 = vmul.f32 %v371, %v424
      %v433 = vmul.f32 %v376, %v424
      %v434 = vmul.f32 %v381, %v424
      %v435 = vmul.f32 %v386, %v424
      %v436 = vmul.f32 %v391, %v424
      %v437 = vmul.f32 %v396, %v424
      %v438 = vmul.f32 %v401, %v424
      %v439 = vmul.f32 %v406, %v424
      %v440 = vmul.f32 %v411, %v424
      %v441 = vmul.f32 %v416, %v424
      %v442 = vld [vmem:[%s3] sm:$0x1]
      %v444 = vlaneseq
      %v445 = vshrl.u32 %v444, 7
      %v446 = vsub.s32 0, %v445
      %v447 = vrot.slane %v442, %v446
      %v449 = vadd.f32 %v426, %v447
      %v450 = vadd.f32 %v427, %v447
      %v451 = vadd.f32 %v428, %v447
      %v452 = vadd.f32 %v429, %v447
      %v453 = vadd.f32 %v430, %v447
      %v454 = vadd.f32 %v431, %v447
      %v455 = vadd.f32 %v432, %v447
      %v456 = vadd.f32 %v433, %v447
      %v457 = vadd.f32 %v434, %v447
      %v458 = vadd.f32 %v435, %v447
      %v459 = vadd.f32 %v436, %v447
      %v460 = vadd.f32 %v437, %v447
      %v461 = vadd.f32 %v438, %v447
      %v462 = vadd.f32 %v439, %v447
      %v463 = vadd.f32 %v440, %v447
      %v464 = vadd.f32 %v441, %v447
      %v465 = vmax.f32 %v449, 0.0
      %v466 = vmax.f32 %v450, 0.0
      %v467 = vmax.f32 %v451, 0.0
      %v468 = vmax.f32 %v452, 0.0
      %v469 = vmax.f32 %v453, 0.0
      %v470 = vmax.f32 %v454, 0.0
      %v471 = vmax.f32 %v455, 0.0
      %v472 = vmax.f32 %v456, 0.0
      %v473 = vmax.f32 %v457, 0.0
      %v474 = vmax.f32 %v458, 0.0
      %v475 = vmax.f32 %v459, 0.0
      %v476 = vmax.f32 %v460, 0.0
      %v477 = vmax.f32 %v461, 0.0
      %v478 = vmax.f32 %v462, 0.0
      %v479 = vmax.f32 %v463, 0.0
      %v480 = vmax.f32 %v464, 0.0
      %vm481 = vcmask 64512
      %482 = vst.msk [vmem:[%s199] sm:$0xff] %vm481, %v465
      %483 = vst.msk [vmem:[%s199 + $0x8] sm:$0xff] %vm481, %v466
      %484 = vst.msk [vmem:[%s199 + $0x10] sm:$0xff] %vm481, %v467
      %485 = vst.msk [vmem:[%s199 + $0x18] sm:$0xff] %vm481, %v468
      %486 = vst.msk [vmem:[%s199 + $0x20] sm:$0xff] %vm481, %v469
      %487 = vst.msk [vmem:[%s199 + $0x28] sm:$0xff] %vm481, %v470
      %488 = vst.msk [vmem:[%s199 + $0x30] sm:$0xff] %vm481, %v471
      %489 = vst.msk [vmem:[%s199 + $0x38] sm:$0xff] %vm481, %v472
      %490 = vst.msk [vmem:[%s199 + $0x40] sm:$0xff] %vm481, %v473
      %491 = vst.msk [vmem:[%s199 + $0x48] sm:$0xff] %vm481, %v474
      %492 = vst.msk [vmem:[%s199 + $0x50] sm:$0xff] %vm481, %v475
      %493 = vst.msk [vmem:[%s199 + $0x58] sm:$0xff] %vm481, %v476
      %494 = vst.msk [vmem:[%s199 + $0x60] sm:$0xff] %vm481, %v477
      %495 = vst.msk [vmem:[%s199 + $0x68] sm:$0xff] %vm481, %v478
      %496 = vst.msk [vmem:[%s199 + $0x70] sm:$0xff] %vm481, %v479
      %497 = vst.msk [vmem:[%s199 + $0x78] sm:$0xff] %vm481, %v480
      %s498 = smul.u32 16, %s15
      %p499 = scmp.lt.s32.totalorder %s498, 63
      %s500 = scalar_select %p499, %s498, 63
      %s501 = smul.addr %s500, 8
      %s502 = scalar_lea.vmem %s4, %s501
      // Predicated region
      $region37: #{tpu_custom_call.1} parent=35 // pred_check
        %p503 = pneg %p122
      $region38: #{tpu_custom_call.1} parent=35 // pred_check_branch
        %505 = sbr.rel (%p503) target = $region40
      $region39: #{tpu_custom_call.1} parent=35 // pred_region
        %s506 = smul.u32 16, %s15
      $region40: #{tpu_custom_call.1} parent=35 // pred_fallthru
        _
    $region36: #{tpu_custom_call.1} parent=5 // pred_fallthru
      _
    %p507 = scmp.le.s32.totalorder 2, %s10
    // Predicated region
    $region41: #{tpu_custom_call.1} parent=5 // pred_check
      %p508 = pneg %p507
    $region42: #{tpu_custom_call.1} parent=5 // pred_check_branch
      %510 = sbr.rel (%p508) target = $region44
    $region43: #{tpu_custom_call.1} parent=5 // pred_region
      %s511 = ssub.s32 %s10, 2
      // Predicated region
      $region45: #{tpu_custom_call.1} parent=43 // pred_check
        %p512 = pneg %p128
      $region46: #{tpu_custom_call.1} parent=43 // pred_check_branch
        %514 = sbr.rel (%p512) target = $region48
      $region47: #{tpu_custom_call.1} parent=43 // pred_region
        %s515 = smul.u32 16, %s16
        %p516 = scmp.lt.s32.totalorder %s515, 63
        %s517 = scalar_select %p516, %s515, 63
        %s518 = smul.addr %s517, 8
        %s519 = scalar_lea.vmem %s4, %s518
      $region48: #{tpu_custom_call.1} parent=43 // pred_fallthru
        _
    $region44: #{tpu_custom_call.1} parent=5 // pred_fallthru
      _
  $region6: #{tpu_custom_call.1} parent=0 // loop_footer
    %s14 = sadd.s32 1, %s10
  $region7: #{tpu_custom_call.1} parent=0 // loop_footer_branch
    %9 = sbr.rel target = $region3
  $region8: #{tpu_custom_call.1} parent=0 // loop_exit
    _

</llo_original>
